<compile_context>
chip_gen: v7x
topology: tpu7x:2x2x1
jax: 0.10.0
libtpu: 0.0.40
codegen_flags: <defaults>
</compile_context>

<pallas_src>
import jax
import jax.numpy as jnp
from jax.experimental import pallas as pl
from jax.experimental.pallas import tpu as pltpu

hidden_layer_sizes = [100, 50]
num_actions = 2
num_state_variables = 4

# packed-layout constants
_H1 = 128                      # padded lane width per first-layer branch
_HID = 2 * _H1                 # 256: packed hidden width (pi | v)
_OUT = 128                     # lane-dense output width (logits in 0:2, value in 2)
_BIAS_LANE = 127               # unused policy-padding lane held at constant 1.0
                               # (carries the second-layer bias through W2)


def _net_kernel(x_ref, w1_ref, b1_ref, w2_ref, out_ref):
    # Fused first layer: one MXU pass + one VPU bias add + relu6 clip.
    h = jnp.dot(x_ref[...], w1_ref[...],
                preferred_element_type=jnp.float32)            # (TB, 256)
    h = jnp.clip(h + b1_ref[...], 0.0, 6.0)                    # lane 127 -> 1.0 exactly

    # Fused block-diagonal second layer; b2 rides on the constant-1 lane.
    out_ref[...] = jnp.dot(h, w2_ref[...],
                           preferred_element_type=jnp.float32).astype(out_ref.dtype)


def pack_params(params):
    """Pack the logical (in, out)-layout weights/biases into the slabs the
    kernel consumes.  Zero padding keeps the two branches exactly independent
    (relu6(0) = 0) and lane _BIAS_LANE is pinned to 1.0 so W2 can carry the
    second-layer biases (bit-identical in f32)."""
    h_pi, h_v = hidden_layer_sizes

    # First-layer weights: (4, 256)  — pi in lanes 0:100, v in lanes 128:178.
    w1 = jnp.zeros((num_state_variables, _HID), jnp.float32)
    w1 = w1.at[:, 0:h_pi].set(params["w_pi1"])
    w1 = w1.at[:, _H1:_H1 + h_v].set(params["w_v1"])

    # First-layer bias row: (1, 256), plus the constant-1 bias lane.
    b1 = jnp.zeros((1, _HID), jnp.float32)
    b1 = b1.at[0, 0:h_pi].set(params["b_pi1"][0])
    b1 = b1.at[0, _H1:_H1 + h_v].set(params["b_v1"][0])
    b1 = b1.at[0, _BIAS_LANE].set(1.0)

    # Second-layer block-diagonal weights: (256, 128), biases in row _BIAS_LANE.
    w2 = jnp.zeros((_HID, _OUT), jnp.float32)
    w2 = w2.at[0:h_pi, 0:num_actions].set(params["w_pi2"])
    w2 = w2.at[_H1:_H1 + h_v, num_actions:num_actions + 1].set(params["w_v2"])
    w2 = w2.at[_BIAS_LANE, 0:num_actions].set(params["b_pi2"][0])
    w2 = w2.at[_BIAS_LANE, num_actions].set(params["b_v2"][0, 0])
    return w1, b1, w2


def _round_up(n, m):
    return ((n + m - 1) // m) * m


def net_forward(x, packed_params, *, block_batch=1024):
    """Run the Net forward pass as a single Pallas TPU kernel.

    x: (B, num_state_variables) float32
    packed_params: output of pack_params(params)
    Returns (logits (B, num_actions), values (B, 1)).
    """
    w1, b1, w2 = packed_params
    B = x.shape[0]

    # Batch tile: small batches stay a single sublane-aligned block; large
    # batches are tiled and sharded across TensorCores ("parallel" grid axis).
    tb = min(block_batch, _round_up(B, 8))
    Bp = _round_up(B, tb)

    x = x.astype(jnp.float32)
    if Bp != B:
        x = jnp.pad(x, ((0, Bp - B), (0, 0)))                  # only op when unaligned

    flops = 2 * Bp * (num_state_variables * _HID + _HID * _OUT)
    bytes_accessed = 4 * (x.size + w1.size + b1.size + w2.size + Bp * _OUT)

    out = pl.pallas_call(
        _net_kernel,
        out_shape=jax.ShapeDtypeStruct((Bp, _OUT), jnp.float32),
        grid=(Bp // tb,),
        in_specs=[
            pl.BlockSpec((tb, num_state_variables), lambda i: (i, 0)),   # x tile
            pl.BlockSpec((num_state_variables, _HID), lambda i: (0, 0)), # w1 (replicated)
            pl.BlockSpec((1, _HID), lambda i: (0, 0)),                   # b1 (replicated)
            pl.BlockSpec((_HID, _OUT), lambda i: (0, 0)),                # w2 (replicated)
        ],
        out_specs=pl.BlockSpec((tb, _OUT), lambda i: (i, 0)),
        compiler_params=pltpu.CompilerParams(
            dimension_semantics=("parallel",)),
        cost_estimate=pl.CostEstimate(
            flops=flops, transcendentals=0, bytes_accessed=bytes_accessed),
    )(x, w1, b1, w2)

    # Padded batch rows (if any) carry bias garbage; sliced away here.
    logits = out[:B, 0:num_actions]
    values = out[:B, num_actions:num_actions + 1]
    return logits, values


def init_params(key):
    """Deterministic init matching set_init: weights ~ N(0, 0.1), biases = 0.
    Weights are stored as (in_features, out_features)."""
    k1, k2, k3, k4 = jax.random.split(key, 4)
    std = 0.1
    return {
        "w_pi1": std * jax.random.normal(k1, (num_state_variables, hidden_layer_sizes[0]), jnp.float32),
        "b_pi1": jnp.zeros((1, hidden_layer_sizes[0]), jnp.float32),
        "w_pi2": std * jax.random.normal(k2, (hidden_layer_sizes[0], num_actions), jnp.float32),
        "b_pi2": jnp.zeros((1, num_actions), jnp.float32),
        "w_v1":  std * jax.random.normal(k3, (num_state_variables, hidden_layer_sizes[1]), jnp.float32),
        "b_v1":  jnp.zeros((1, hidden_layer_sizes[1]), jnp.float32),
        "w_v2":  std * jax.random.normal(k4, (hidden_layer_sizes[1], 1), jnp.float32),
        "b_v2":  jnp.zeros((1, 1), jnp.float32),
    }


def _reference_forward(x, params):
    pi1 = jnp.clip(x @ params["w_pi1"] + params["b_pi1"], 0.0, 6.0)
    logits = pi1 @ params["w_pi2"] + params["b_pi2"]
    v1 = jnp.clip(x @ params["w_v1"] + params["b_v1"], 0.0, 6.0)
    values = v1 @ params["w_v2"] + params["b_v2"]
    return logits, values


if __name__ == "__main__":
    key = jax.random.PRNGKey(0)
    kx, kp = jax.random.split(key)

    B = 8  # small, sublane-aligned batch
    x = jax.random.normal(kx, (B, num_state_variables), jnp.float32)
    params = init_params(kp)
    packed = pack_params(params)

    logits, values = net_forward(x, packed)
    jax.block_until_ready((logits, values))

    # sanity check vs pure-JAX reference (unfused, unpacked math)
    ref_logits, ref_values = _reference_forward(x, params)
    assert logits.shape == (B, num_actions) and values.shape == (B, 1)
    assert jnp.allclose(logits, ref_logits, atol=1e-5, rtol=1e-5)
    assert jnp.allclose(values, ref_values, atol=1e-5, rtol=1e-5)

    print("KERNEL_OK")
</pallas_src>

<mosaic_0001>
module attributes {stable_mosaic.version = 11 : i64} {
  func.func @_net_kernel(%arg0: i32, %arg1: memref<8x4xf32, #tpu.memory_space<vmem>>, %arg2: memref<4x256xf32, #tpu.memory_space<vmem>>, %arg3: memref<1x256xf32, #tpu.memory_space<vmem>>, %arg4: memref<256x128xf32, #tpu.memory_space<vmem>>, %arg5: memref<8x128xf32, #tpu.memory_space<vmem>>) attributes {dimension_semantics = [#tpu.dimension_semantics<parallel>], iteration_bounds = array<i64: 1>, scalar_prefetch = 0 : i64, scratch_operands = 0 : i64, tpu.core_type = #tpu.core_type<tc>, window_params = [{transform_indices = @transform_0, window_bounds = array<i64: 8, 4>}, {pipeline_mode = #tpu.pipeline_mode<synchronous>, transform_indices = @transform_1, window_bounds = array<i64: 4, 256>}, {pipeline_mode = #tpu.pipeline_mode<synchronous>, transform_indices = @transform_2, window_bounds = array<i64: 1, 256>}, {pipeline_mode = #tpu.pipeline_mode<synchronous>, transform_indices = @transform_3, window_bounds = array<i64: 256, 128>}, {transform_indices = @transform_4, window_bounds = array<i64: 8, 128>}]} {
    %c0 = arith.constant 0 : index
    %c0_0 = arith.constant 0 : index
    %0 = vector.load %arg1[%c0, %c0_0] : memref<8x4xf32, #tpu.memory_space<vmem>>, vector<8x4xf32>
    %c0_1 = arith.constant 0 : index
    %c0_2 = arith.constant 0 : index
    %1 = vector.load %arg2[%c0_1, %c0_2] : memref<4x256xf32, #tpu.memory_space<vmem>>, vector<4x256xf32>
    %cst = arith.constant dense<0.000000e+00> : vector<8x256xf32>
    %2 = tpu.matmul %0, %1, %cst {dimension_numbers = #tpu.dot_dimension_numbers<[1], [0], [0], [1], [0, 0, 1, 1], [], []>} : vector<8x4xf32>, vector<4x256xf32>, vector<8x256xf32> -> vector<8x256xf32>
    %c0_3 = arith.constant 0 : index
    %c0_4 = arith.constant 0 : index
    %3 = vector.load %arg3[%c0_3, %c0_4] : memref<1x256xf32, #tpu.memory_space<vmem>>, vector<1x256xf32>
    %4 = vector.broadcast %3 : vector<1x256xf32> to vector<8x256xf32>
    %5 = arith.addf %2, %4 : vector<8x256xf32>
    %cst_5 = arith.constant 0.000000e+00 : f32
    %cst_6 = arith.constant 6.000000e+00 : f32
    %6 = vector.broadcast %cst_5 : f32 to vector<8x256xf32>
    %7 = arith.maximumf %6, %5 : vector<8x256xf32>
    %8 = vector.broadcast %cst_6 : f32 to vector<8x256xf32>
    %9 = arith.minimumf %8, %7 : vector<8x256xf32>
    %c0_7 = arith.constant 0 : index
    %c0_8 = arith.constant 0 : index
    %10 = vector.load %arg4[%c0_7, %c0_8] : memref<256x128xf32, #tpu.memory_space<vmem>>, vector<256x128xf32>
    %cst_9 = arith.constant dense<0.000000e+00> : vector<8x128xf32>
    %11 = tpu.matmul %9, %10, %cst_9 {dimension_numbers = #tpu.dot_dimension_numbers<[1], [0], [0], [1], [0, 0, 1, 1], [], []>} : vector<8x256xf32>, vector<256x128xf32>, vector<8x128xf32> -> vector<8x128xf32>
    %c0_10 = arith.constant 0 : index
    %c0_11 = arith.constant 0 : index
    %12 = vector.load %arg5[%c0_10, %c0_11] : memref<8x128xf32, #tpu.memory_space<vmem>>, vector<8x128xf32>
    tpu.vector_store %arg5[%c0_10, %c0_11], %11 {strides = array<i32>} : memref<8x128xf32, #tpu.memory_space<vmem>>, vector<8x128xf32>,
    return
  }
  func.func @transform_0(%arg0: i32) -> (i32, i32) {
    %c0_i32 = arith.constant 0 : i32
    %c0_i32_0 = arith.constant 0 : i32
    return %arg0, %c0_i32 : i32, i32
  }
  func.func @transform_1(%arg0: i32) -> (i32, i32) {
    %c0_i32 = arith.constant 0 : i32
    %c0_i32_0 = arith.constant 0 : i32
    %c0_i32_1 = arith.constant 0 : i32
    return %c0_i32, %c0_i32_0 : i32, i32
  }
  func.func @transform_2(%arg0: i32) -> (i32, i32) {
    %c0_i32 = arith.constant 0 : i32
    %c0_i32_0 = arith.constant 0 : i32
    %c0_i32_1 = arith.constant 0 : i32
    return %c0_i32, %c0_i32_0 : i32, i32
  }
  func.func @transform_3(%arg0: i32) -> (i32, i32) {
    %c0_i32 = arith.constant 0 : i32
    %c0_i32_0 = arith.constant 0 : i32
    %c0_i32_1 = arith.constant 0 : i32
    return %c0_i32, %c0_i32_0 : i32, i32
  }
  func.func @transform_4(%arg0: i32) -> (i32, i32) {
    %c0_i32 = arith.constant 0 : i32
    %c0_i32_0 = arith.constant 0 : i32
    return %arg0, %c0_i32 : i32, i32
  }
}

</mosaic_0001>

<llo_original>
// kernel: tpu_custom_call.1
$region0: #{tpu_custom_call.1}
  #allocation0 [shape = 'u32[]', space=smem, size = 0x4, offset = 0x4, fixed_abs, tag = 'smem constant byte address 0x4 - core index']
  #allocation1 [shape = 'u32[144,128]{1,0:T(1,128)}', space=vmem, size = 0x12000, scoped, tag = 'internal scratch']
  %s0 = inlined_call_operand.vmem [shape: f32[8,4], index: 0, kind: input, shape index: {}]
  %s1 = inlined_call_operand.vmem [shape: f32[4,256], index: 1, kind: input, shape index: {}]
  %s2 = inlined_call_operand.vmem [shape: f32[1,256], index: 2, kind: input, shape index: {}]
  %s3 = inlined_call_operand.hbm [shape: f32[256,128], index: 3, kind: input, shape index: {}]
  %s4 = inlined_call_operand.hbm [shape: f32[8,128], index: 4, kind: output, shape index: {}]
  %s5 = sld [smem:[#allocation0]]
  $region30: #{tpu_custom_call.1} parent=0
    _
  %s7 = ssub.s32 1, %s5
  %s8 = scalar_select 0, %s7, %s5
  $region1: #{tpu_custom_call.1} parent=0
    #allocation2 [shape = 'u8[131072]{0}', space=vmem, size = 0x20000, scoped, tag = 'input window, operand 3, single buffered']
    #allocation3 [shape = 's32[1]{0}', space=sflag, size = 0x4, scoped, tag = 'scoped memory for tpu_custom_call.1']
    #allocation4 [shape = 's32[1]{0}', space=sflag, size = 0x4, scoped, tag = 'scoped memory for tpu_custom_call.1']
    #allocation5 [shape = 'u8[4096]{0}', space=vmem, size = 0x1000, scoped, tag = 'output window, operand 0, single buffered']
    %9 = vsyncpa [#allocation3], 0
    %10 = vsyncpa [#allocation4], 0
    // Predicated region
    $region2: #{tpu_custom_call.1} parent=1 // pred_check
      _
    $region3: #{tpu_custom_call.1} parent=1 // pred_check_branch
      %12 = sbr.rel (0) target = $region5
    $region4: #{tpu_custom_call.1} parent=1 // pred_region
      _
    $region5: #{tpu_custom_call.1} parent=1 // pred_fallthru
      _
    // Predicated region
    $region6: #{tpu_custom_call.1} parent=1 // pred_check
      _
    $region7: #{tpu_custom_call.1} parent=1 // pred_check_branch
      %14 = sbr.rel (0) target = $region9
    $region8: #{tpu_custom_call.1} parent=1 // pred_region
      _
    $region9: #{tpu_custom_call.1} parent=1 // pred_fallthru
      _
    // Predicated region
    $region10: #{tpu_custom_call.1} parent=1 // pred_check
      _
    $region11: #{tpu_custom_call.1} parent=1 // pred_check_branch
      %16 = sbr.rel (0) target = $region13
    $region12: #{tpu_custom_call.1} parent=1 // pred_region
      _
    $region13: #{tpu_custom_call.1} parent=1 // pred_fallthru
      _
    // Predicated region
    $region14: #{tpu_custom_call.1} parent=1 // pred_check
      _
    $region15: #{tpu_custom_call.1} parent=1 // pred_check_branch
      %18 = sbr.rel (0) target = $region17
    $region16: #{tpu_custom_call.1} parent=1 // pred_region
      %s20 = ssub.s32 4096, 4096
      %21 = vsyncadd [#allocation3], %s20
      %s22 = sshll.u32 [#allocation2], 4
      %s23 = int_to_ptr.vmem [resolvable:$true] %s22
      %28 = dma.hbm_to_vmem [thread:$0]  %s3, 4096, %s23, [#allocation3], 128, 128, 8
    $region17: #{tpu_custom_call.1} parent=1 // pred_fallthru
      _
    // Predicated region
    $region18: #{tpu_custom_call.1} parent=1 // pred_check
      _
    $region19: #{tpu_custom_call.1} parent=1 // pred_check_branch
      %30 = sbr.rel (0) target = $region21
    $region20: #{tpu_custom_call.1} parent=1 // pred_region
      %31 = dma.done [#allocation3], 4096
    $region21: #{tpu_custom_call.1} parent=1 // pred_fallthru
      _
    %v32 = vld [vmem:[%s0] sm:$0xff]
    %v33 = vld [vmem:[%s1] sm:$0xff]
    %v34 = vld [vmem:[%s2] sm:$0x3]
    %v36 = vlaneseq
    %v37 = vshrl.u32 %v36, 7
    %v38 = vsub.s32 0, %v37
    %v39 = vrot.slane %v34, %v38
    %v40 = vlaneseq
    %v41 = vshrl.u32 %v40, 7
    %v42 = vsub.s32 1, %v41
    %v43 = vrot.slane %v34, %v42
    %v47 = vcombine.high %v33, %v33
    %vm48 = vcmask 31744
    %v50 = vsel %vm48, %v32, 0
    %vm52 = vcmask 1043456
    %v53 = vsel %vm52, %v33, 0
    %v55 = vsel %vm52, %v47, 0
    %57 = vmatprep.subr.mxu0 %v55
    %58 = vmatpush1.msra.mxu0 %v53
    %59 = vmatprep.subr.mxu0 0.0
    %60 = vmatpush1.msra.mxu0 0.0
    %61 = vmatprep.subr.mxu0 0.0
    %62 = vmatpush1.msra.mxu0 0.0
    %63 = vmatprep.subr.mxu0 0.0
    %64 = vmatpush1.msra.mxu0 0.0
    %65 = vmatprep.subr.mxu0 0.0
    %66 = vmatpush1.msra.mxu0 0.0
    %67 = vmatprep.subr.mxu0 0.0
    %68 = vmatpush1.msra.mxu0 0.0
    %69 = vmatprep.subr.mxu0 0.0
    %70 = vmatpush1.msra.mxu0 0.0
    %71 = vmatprep.subr.mxu0 0.0
    %72 = vmatpush1.msra.mxu0 0.0
    %73 = vmatprep.subr.mxu0 0.0
    %74 = vmatpush1.msra.mxu0 0.0
    %75 = vmatprep.subr.mxu0 0.0
    %76 = vmatpush1.msra.mxu0 0.0
    %77 = vmatprep.subr.mxu0 0.0
    %78 = vmatpush1.msra.mxu0 0.0
    %79 = vmatprep.subr.mxu0 0.0
    %80 = vmatpush1.msra.mxu0 0.0
    %81 = vmatprep.subr.mxu0 0.0
    %82 = vmatpush1.msra.mxu0 0.0
    %83 = vmatprep.subr.mxu0 0.0
    %84 = vmatpush1.msra.mxu0 0.0
    %85 = vmatprep.subr.mxu0 0.0
    %86 = vmatpush1.msra.mxu0 0.0
    %87 = vmatprep.subr.mxu0 0.0
    %88 = vmatpush1.msra.mxu0 0.0
    %89 = vmatprep.subr.mxu0 0.0
    %90 = vmatpush1.msra.mxu0 0.0
    %91 = vmatprep.subr.mxu0 0.0
    %92 = vmatpush1.msra.mxu0 0.0
    %93 = vmatprep.subr.mxu0 0.0
    %94 = vmatpush1.msra.mxu0 0.0
    %95 = vmatprep.subr.mxu0 0.0
    %96 = vmatpush1.msra.mxu0 0.0
    %97 = vmatprep.subr.mxu0 0.0
    %98 = vmatpush1.msra.mxu0 0.0
    %99 = vmatprep.subr.mxu0 0.0
    %100 = vmatpush1.msra.mxu0 0.0
    %101 = vmatprep.subr.mxu0 0.0
    %102 = vmatpush1.msra.mxu0 0.0
    %103 = vmatprep.subr.mxu0 0.0
    %104 = vmatpush1.msra.mxu0 0.0
    %105 = vmatprep.subr.mxu0 0.0
    %106 = vmatpush1.msra.mxu0 0.0
    %107 = vmatprep.subr.mxu0 0.0
    %108 = vmatpush1.msra.mxu0 0.0
    %109 = vmatprep.subr.mxu0 0.0
    %110 = vmatpush1.msra.mxu0 0.0
    %111 = vmatprep.subr.mxu0 0.0
    %112 = vmatpush1.msra.mxu0 0.0
    %113 = vmatprep.subr.mxu0 0.0
    %114 = vmatpush1.msra.mxu0 0.0
    %115 = vmatprep.subr.mxu0 0.0
    %116 = vmatpush1.msra.mxu0 0.0
    %117 = vmatprep.subr.mxu0 0.0
    %118 = vmatpush1.msra.mxu0 0.0
    %119 = vmatprep.subr.mxu0 0.0
    %120 = vmatpush1.msra.mxu0 0.0
    %121 = vmatprep.mubr.f32.mxu0 0.0
    %122 = vmatmul.mubr.f32.gmra.mrb[0].mxu0 %v50
    %v123 = vpop.f32.mrb[0].mxu0
    %v124 = vadd.f32 %v39, %v123
    %v125 = vpop.f32.mrb[0].mxu0
    %v126 = vadd.f32 %v43, %v125
    %127 = vdwg.mxu0
    %v128 = vmax.f32 %v124, 0.0
    %v129 = vmax.f32 %v126, 0.0
    %v130 = vmin.f32 %v128, 6.0
    %v131 = vmin.f32 %v129, 6.0
    %v132 = vld [vmem:[#allocation2] sm:$0xff]
    %v133 = vld [vmem:[#allocation2 + $0x8] sm:$0xff]
    %v134 = vld [vmem:[#allocation2 + $0x10] sm:$0xff]
    %v135 = vld [vmem:[#allocation2 + $0x18] sm:$0xff]
    %v136 = vld [vmem:[#allocation2 + $0x20] sm:$0xff]
    %v137 = vld [vmem:[#allocation2 + $0x28] sm:$0xff]
    %v138 = vld [vmem:[#allocation2 + $0x30] sm:$0xff]
    %v139 = vld [vmem:[#allocation2 + $0x38] sm:$0xff]
    %v140 = vld [vmem:[#allocation2 + $0x40] sm:$0xff]
    %v141 = vld [vmem:[#allocation2 + $0x48] sm:$0xff]
    %v142 = vld [vmem:[#allocation2 + $0x50] sm:$0xff]
    %v143 = vld [vmem:[#allocation2 + $0x58] sm:$0xff]
    %v144 = vld [vmem:[#allocation2 + $0x60] sm:$0xff]
    %v145 = vld [vmem:[#allocation2 + $0x68] sm:$0xff]
    %v146 = vld [vmem:[#allocation2 + $0x70] sm:$0xff]
    %v147 = vld [vmem:[#allocation2 + $0x78] sm:$0xff]
    %v148 = vld [vmem:[#allocation2 + $0x80] sm:$0xff]
    %v149 = vld [vmem:[#allocation2 + $0x88] sm:$0xff]
    %v150 = vld [vmem:[#allocation2 + $0x90] sm:$0xff]
    %v151 = vld [vmem:[#allocation2 + $0x98] sm:$0xff]
    %v152 = vld [vmem:[#allocation2 + $0xa0] sm:$0xff]
    %v153 = vld [vmem:[#allocation2 + $0xa8] sm:$0xff]
    %v154 = vld [vmem:[#allocation2 + $0xb0] sm:$0xff]
    %v155 = vld [vmem:[#allocation2 + $0xb8] sm:$0xff]
    %v156 = vld [vmem:[#allocation2 + $0xc0] sm:$0xff]
    %v157 = vld [vmem:[#allocation2 + $0xc8] sm:$0xff]
    %v158 = vld [vmem:[#allocation2 + $0xd0] sm:$0xff]
    %v159 = vld [vmem:[#allocation2 + $0xd8] sm:$0xff]
    %v160 = vld [vmem:[#allocation2 + $0xe0] sm:$0xff]
    %v161 = vld [vmem:[#allocation2 + $0xe8] sm:$0xff]
    %v162 = vld [vmem:[#allocation2 + $0xf0] sm:$0xff]
    %v163 = vld [vmem:[#allocation2 + $0xf8] sm:$0xff]
    %164 = vmatprep.subr.mxu0 0.0
    %165 = vmatpush1.msra.mxu0 %v132
    %166 = vmatprep.subr.mxu0 0.0
    %167 = vmatpush1.msra.mxu0 %v133
    %168 = vmatprep.subr.mxu0 0.0
    %169 = vmatpush1.msra.mxu0 %v134
    %170 = vmatprep.subr.mxu0 0.0
    %171 = vmatpush1.msra.mxu0 %v135
    %172 = vmatprep.subr.mxu0 0.0
    %173 = vmatpush1.msra.mxu0 %v136
    %174 = vmatprep.subr.mxu0 0.0
    %175 = vmatpush1.msra.mxu0 %v137
    %176 = vmatprep.subr.mxu0 0.0
    %177 = vmatpush1.msra.mxu0 %v138
    %178 = vmatprep.subr.mxu0 0.0
    %179 = vmatpush1.msra.mxu0 %v139
    %180 = vmatprep.subr.mxu0 0.0
    %181 = vmatpush1.msra.mxu0 %v140
    %182 = vmatprep.subr.mxu0 0.0
    %183 = vmatpush1.msra.mxu0 %v141
    %184 = vmatprep.subr.mxu0 0.0
    %185 = vmatpush1.msra.mxu0 %v142
    %186 = vmatprep.subr.mxu0 0.0
    %187 = vmatpush1.msra.mxu0 %v143
    %188 = vmatprep.subr.mxu0 0.0
    %189 = vmatpush1.msra.mxu0 %v144
    %190 = vmatprep.subr.mxu0 0.0
    %191 = vmatpush1.msra.mxu0 %v145
    %192 = vmatprep.subr.mxu0 0.0
    %193 = vmatpush1.msra.mxu0 %v146
    %194 = vmatprep.subr.mxu0 0.0
    %195 = vmatpush1.msra.mxu0 %v147
    %196 = vmatprep.subr.mxu0 0.0
    %197 = vmatpush1.msra.mxu0 %v148
    %198 = vmatprep.subr.mxu0 0.0
    %199 = vmatpush1.msra.mxu0 %v149
    %200 = vmatprep.subr.mxu0 0.0
    %201 = vmatpush1.msra.mxu0 %v150
    %202 = vmatprep.subr.mxu0 0.0
    %203 = vmatpush1.msra.mxu0 %v151
    %204 = vmatprep.subr.mxu0 0.0
    %205 = vmatpush1.msra.mxu0 %v152
    %206 = vmatprep.subr.mxu0 0.0
    %207 = vmatpush1.msra.mxu0 %v153
    %208 = vmatprep.subr.mxu0 0.0
    %209 = vmatpush1.msra.mxu0 %v154
    %210 = vmatprep.subr.mxu0 0.0
    %211 = vmatpush1.msra.mxu0 %v155
    %212 = vmatprep.subr.mxu0 0.0
    %213 = vmatpush1.msra.mxu0 %v156
    %214 = vmatprep.subr.mxu0 0.0
    %215 = vmatpush1.msra.mxu0 %v157
    %216 = vmatprep.subr.mxu0 0.0
    %217 = vmatpush1.msra.mxu0 %v158
    %218 = vmatprep.subr.mxu0 0.0
    %219 = vmatpush1.msra.mxu0 %v159
    %220 = vmatprep.subr.mxu0 0.0
    %221 = vmatpush1.msra.mxu0 %v160
    %222 = vmatprep.subr.mxu0 0.0
    %223 = vmatpush1.msra.mxu0 %v161
    %224 = vmatprep.subr.mxu0 0.0
    %225 = vmatpush1.msra.mxu0 %v162
    %226 = vmatprep.subr.mxu0 0.0
    %227 = vmatpush1.msra.mxu0 %v163
    %228 = vmatprep.mubr.f32.mxu0 %v131
    %229 = vmatmul.mubr.f32.gmra.mrb[0].mxu0 %v130
    %v230 = vpop.f32.mrb[0].mxu0
    %v231 = vadd.f32 0.0, %v230
    %v232 = vpop.f32.mrb[0].mxu0
    %233 = vdwg.mxu0
    %234 = vst [vmem:[#allocation5] sm:$0xff] %v231
    // Predicated region
    $region22: #{tpu_custom_call.1} parent=1 // pred_check
      _
    $region23: #{tpu_custom_call.1} parent=1 // pred_check_branch
      %236 = sbr.rel (0) target = $region25
    $region24: #{tpu_custom_call.1} parent=1 // pred_region
      %s238 = ssub.s32 128, 128
      %239 = vsyncadd [#allocation4], %s238
      %s241 = sshll.u32 [#allocation5], 4
      %s242 = int_to_ptr.vmem [resolvable:$true] %s241
      %244 = dma.vmem_to_hbm [thread:$0]  %s242, 128, %s4, [#allocation4]
    $region25: #{tpu_custom_call.1} parent=1 // pred_fallthru
      _
    // Predicated region
    $region26: #{tpu_custom_call.1} parent=1 // pred_check
      _
    $region27: #{tpu_custom_call.1} parent=1 // pred_check_branch
      %246 = sbr.rel (0) target = $region29
    $region28: #{tpu_custom_call.1} parent=1 // pred_region
      %247 = dma.done [#allocation4], 128
    $region29: #{tpu_custom_call.1} parent=1 // pred_fallthru
      _
    %248 = vsyncpa [#allocation3], 1
    %249 = vsyncpa [#allocation4], 1

</llo_original>
